<compile_context>
chip_gen: v5e
topology: v5e:2x2
jax: 0.10.0
libtpu: 0.0.40
codegen_flags: <defaults>
</compile_context>

<pallas_src>
import jax
import jax.numpy as jnp
from jax import lax
from jax.experimental import pallas as pl
from jax.experimental.pallas import tpu as pltpu


MAX_TILE_B = 8192   # largest batch tile (tunable); even at 8192 the activation
                    # footprint is <3 MiB, far under every generation's VMEM.
LANE_PAD = 128      # pad the slab's lane dim to a multiple of the 128-lane vreg.


# ----------------------------- Pallas kernel --------------------------------
def _critic_twin_kernel(state_ref, action_ref, w_ref, out_ref):
    # Static geometry derived from ref shapes (Python ints at trace time).
    n_states = state_ref.shape[1]
    n_actions = action_ref.shape[1]
    L = w_ref.shape[1]                 # lane-padded fused width (>= 2*hidden)
    d_in = n_states + n_actions

    # Slab row offsets (must match pack_params()).
    r_w2 = d_in
    r_w3t = d_in + L
    r_b1 = r_w3t + 2
    r_b2 = r_b1 + 1
    r_b3 = r_b2 + 1                    # two rows: b3a, b3b (lane 0)

    s = state_ref[...]                 # (B, n_states)
    a = action_ref[...]                # (B, n_actions)

    w1_s = w_ref[0:n_states, :]        # (n_states, L)  fused layer-1 (state rows)
    w1_a = w_ref[n_states:d_in, :]     # (n_actions, L) fused layer-1 (action rows)
    w2 = w_ref[r_w2:r_w3t, :]          # (L, L)  block-diagonal fused layer-2
    w3t = w_ref[r_w3t:r_w3t + 2, :]    # (2, L)  fused layer-3, stored transposed
    b1 = w_ref[r_b1:r_b1 + 1, :]       # (1, L)
    b2 = w_ref[r_b2:r_b2 + 1, :]       # (1, L)
    b3 = w_ref[r_b3:r_b3 + 2, 0:1]     # (2, 1) column: [b3a; b3b]

    # Layer 1 (both heads at once); split matmul replaces a JAX-side concat.
    h = (jnp.dot(s, w1_s, preferred_element_type=jnp.float32)
         + jnp.dot(a, w1_a, preferred_element_type=jnp.float32)
         + b1)
    h = jnp.maximum(h, 0.0)            # padded lanes: relu(0) = 0

    # Layer 2 (block-diagonal keeps the two heads independent).
    h = jnp.dot(h, w2, preferred_element_type=jnp.float32) + b2
    h = jnp.maximum(h, 0.0)

    # Layer 3, batch axis LAST for a lane-dense store:
    #   q[j, b] = sum_k w3t[j, k] * h[b, k]    -> (2, B)
    q = lax.dot_general(
        w3t, h,
        dimension_numbers=(((1,), (1,)), ((), ())),
        preferred_element_type=jnp.float32,
    ) + b3

    out_ref[...] = q                   # row 0 = Q1, row 1 = Q2 (lane-dense)


# --------------------------- batch tiling policy -----------------------------
def _pick_batch_tiling(B):
    """Pick a small, even number of large batch tiles.

    v7x: >=2 steps lets dimension_semantics=('parallel',) shard the batch axis
    across the 2 TensorCores.  v5e/v6e: the grid is a serial loop, so we keep
    the step count minimal (the per-step ~0.35 us overhead dominates the tiny
    per-step DMA).  Returns (num_steps, tile) or None -> single invocation.
    """
    if B < 16 or B % 2:
        return None
    for steps in (2, 4, 8, 16, 32, 64, 128):
        if B % steps == 0:
            tile = B // steps
            if tile % 8 == 0 and tile <= MAX_TILE_B:
                return steps, tile
    return None


# --------------------------------- wrapper -----------------------------------
@jax.jit
def critic_twin_forward(state, action, slab):
    """Forward pass of CriticTwin. Returns (Q1, Q2), each of shape (B, 1)."""
    B = state.shape[0]
    n_states = state.shape[1]
    n_actions = action.shape[1]
    R, L = slab.shape

    out_shape = jax.ShapeDtypeStruct((2, B), jnp.float32)
    tiling = _pick_batch_tiling(B)

    if tiling is not None:
        steps, tile = tiling
        # Batch-tiled path: activations stream in a few large tiles, the
        # weight slab stays resident (index_map always returns block 0).
        q = pl.pallas_call(
            _critic_twin_kernel,
            out_shape=out_shape,
            grid_spec=pltpu.PrefetchScalarGridSpec(
                num_scalar_prefetch=0,
                grid=(steps,),
                in_specs=[
                    pl.BlockSpec((tile, n_states), lambda i: (i, 0)),
                    pl.BlockSpec((tile, n_actions), lambda i: (i, 0)),
                    pl.BlockSpec((R, L), lambda i: (0, 0)),
                ],
                out_specs=pl.BlockSpec((2, tile), lambda i: (0, i)),
            ),
            compiler_params=pltpu.CompilerParams(
                dimension_semantics=("parallel",)),
        )(state, action, slab)
    else:
        # Small / irregular batch: everything resident in VMEM, one invocation.
        vmem = pl.BlockSpec(memory_space=pltpu.MemorySpace.VMEM)
        q = pl.pallas_call(
            _critic_twin_kernel,
            out_shape=out_shape,
            in_specs=[vmem, vmem, vmem],
            out_specs=vmem,
        )(state, action, slab)

    return q[0:1, :].T, q[1:2, :].T


# -------------------------- parameter construction ---------------------------
def _orthogonal_column(key, n_rows, std=1.0):
    """Orthogonal init (QR) for a (n_rows, 1) weight column, gain=std."""
    a = jax.random.normal(key, (n_rows, 1), dtype=jnp.float32)
    q, r = jnp.linalg.qr(a)
    q = q * jnp.sign(jnp.diagonal(r))[None, :]
    return std * q  # (n_rows, 1)


def _uniform_linear(key, fan_in, fan_out):
    """Deterministic stand-in for PyTorch's default Linear init."""
    kw, kb = jax.random.split(key)
    bound = 1.0 / jnp.sqrt(jnp.float32(fan_in))
    w = jax.random.uniform(kw, (fan_in, fan_out), jnp.float32, -bound, bound)
    b = jax.random.uniform(kb, (1, fan_out), jnp.float32, -bound, bound)
    return w, b


def make_params(key, n_states, n_actions, hidden):
    d_in = n_states + n_actions
    keys = jax.random.split(key, 6)

    # head 1
    w1a, b1a = _uniform_linear(keys[0], d_in, hidden)
    w2a, b2a = _uniform_linear(keys[1], hidden, hidden)
    w3a = _orthogonal_column(keys[2], hidden, std=1.0)   # reset_parameters
    b3a = jnp.full((1, 1), 1e-6, dtype=jnp.float32)

    # head 2
    w1b, b1b = _uniform_linear(keys[3], d_in, hidden)
    w2b, b2b = _uniform_linear(keys[4], hidden, hidden)
    w3b = _orthogonal_column(keys[5], hidden, std=1.0)   # reset_parameters
    b3b = jnp.full((1, 1), 1e-6, dtype=jnp.float32)

    return (w1a, b1a, w2a, b2a, w3a, b3a,
            w1b, b1b, w2b, b2b, w3b, b3b)


def pack_params(params, n_states, n_actions, hidden):
    """Pack the 12 raw tensors into one lane-dense (d_in + L + 6, L) slab.

    L = 2*hidden rounded up to a multiple of 128 (lane padding; padded weight
    columns/rows and biases are zero, so padded lanes carry exact zeros through
    both ReLU layers and drop out of the final dot).

    Row layout (matches _critic_twin_kernel):
      [0, n_states)         fused W1, state rows         (n_states, L)
      [n_states, d_in)      fused W1, action rows        (n_actions, L)
      [d_in, d_in+L)        block-diagonal fused W2      (L, L)
      [d_in+L, d_in+L+2)    fused W3 stored transposed   (2, L)
      d_in+L+2              fused b1                     (1, L)
      d_in+L+3              fused b2                     (1, L)
      d_in+L+4, d_in+L+5    b3a, b3b (lane 0)            (2, L)
    """
    (w1a, b1a, w2a, b2a, w3a, b3a,
     w1b, b1b, w2b, b2b, w3b, b3b) = params
    H = hidden
    two_h = 2 * H
    L = ((two_h + LANE_PAD - 1) // LANE_PAD) * LANE_PAD
    d_in = n_states + n_actions

    def pad_lanes(x):
        return jnp.pad(x, ((0, 0), (0, L - x.shape[1])))

    w1_f = pad_lanes(jnp.concatenate([w1a, w1b], axis=1))        # (d_in, L)
    w1_state, w1_action = w1_f[:n_states], w1_f[n_states:]

    w2_f = jnp.zeros((L, L), jnp.float32)
    w2_f = w2_f.at[:H, :H].set(w2a).at[H:two_h, H:two_h].set(w2b)  # block-diag
    # NOTE: at H=32 the 64x64 live block fits one MXU tile on every generation;
    # if hidden grows so 2H exceeds the MXU width, un-fuse layer 2 instead.

    w3t = jnp.zeros((2, L), jnp.float32)
    w3t = w3t.at[0, :H].set(w3a[:, 0]).at[1, H:two_h].set(w3b[:, 0])

    b1_f = pad_lanes(jnp.concatenate([b1a, b1b], axis=1))        # (1, L)
    b2_f = pad_lanes(jnp.concatenate([b2a, b2b], axis=1))        # (1, L)
    b3_rows = jnp.zeros((2, L), jnp.float32)
    b3_rows = b3_rows.at[0, 0].set(b3a[0, 0]).at[1, 0].set(b3b[0, 0])

    slab = jnp.concatenate(
        [w1_state, w1_action, w2_f, w3t, b1_f, b2_f, b3_rows], axis=0)
    return slab.astype(jnp.float32)


# ------------------------------ reference (JAX) ------------------------------
def reference_forward(state, action, params):
    cat = jnp.concatenate([state, action], axis=1)
    (w1a, b1a, w2a, b2a, w3a, b3a,
     w1b, b1b, w2b, b2b, w3b, b3b) = params

    def mlp(x, w1, b1, w2, b2, w3, b3):
        h = jnp.maximum(x @ w1 + b1, 0.0)
        h = jnp.maximum(h @ w2 + b2, 0.0)
        return h @ w3 + b3

    return (mlp(cat, w1a, b1a, w2a, b2a, w3a, b3a),
            mlp(cat, w1b, b1b, w2b, b2b, w3b, b3b))


# ----------------------------------- main ------------------------------------
if __name__ == "__main__":
    n_states, n_actions, hidden = 12, 4, 32

    key = jax.random.PRNGKey(0)
    k_params, k_s1, k_a1, k_s2, k_a2 = jax.random.split(key, 5)

    params = make_params(k_params, n_states, n_actions, hidden)
    slab = pack_params(params, n_states, n_actions, hidden)  # packed once

    # --- small batch: single-invocation, everything resident in VMEM ---------
    batch = 4
    state = jax.random.normal(k_s1, (batch, n_states), dtype=jnp.float32)
    action = jax.random.normal(k_a1, (batch, n_actions), dtype=jnp.float32)

    q1, q2 = critic_twin_forward(state, action, slab)
    jax.block_until_ready((q1, q2))

    q1_ref, q2_ref = reference_forward(state, action, params)
    assert q1.shape == (batch, 1) and q2.shape == (batch, 1)
    assert jnp.allclose(q1, q1_ref, atol=1e-5, rtol=1e-5)
    assert jnp.allclose(q2, q2_ref, atol=1e-5, rtol=1e-5)

    # --- large batch: exercises the batch-tiled "parallel" grid path ---------
    big = 512  # -> 2 tiles of 256 (even step count for v7x's 2 TensorCores)
    state_b = jax.random.normal(k_s2, (big, n_states), dtype=jnp.float32)
    action_b = jax.random.normal(k_a2, (big, n_actions), dtype=jnp.float32)

    q1b, q2b = critic_twin_forward(state_b, action_b, slab)
    jax.block_until_ready((q1b, q2b))

    q1b_ref, q2b_ref = reference_forward(state_b, action_b, params)
    assert q1b.shape == (big, 1) and q2b.shape == (big, 1)
    assert jnp.allclose(q1b, q1b_ref, atol=1e-5, rtol=1e-5)
    assert jnp.allclose(q2b, q2b_ref, atol=1e-5, rtol=1e-5)

    print("KERNEL_OK")
</pallas_src>

<mosaic_0001>
module attributes {stable_mosaic.version = 11 : i64} {
  func.func @_critic_twin_kernel(%arg0: memref<4x12xf32, #tpu.memory_space<vmem>>, %arg1: memref<4x4xf32, #tpu.memory_space<vmem>>, %arg2: memref<150x128xf32, #tpu.memory_space<vmem>>, %arg3: memref<2x4xf32, #tpu.memory_space<vmem>>) attributes {dimension_semantics = [], scalar_prefetch = 0 : i64, scratch_operands = 0 : i64, tpu.core_type = #tpu.core_type<tc>} {
    %c0 = arith.constant 0 : index
    %c0_0 = arith.constant 0 : index
    %0 = vector.load %arg0[%c0, %c0_0] : memref<4x12xf32, #tpu.memory_space<vmem>>, vector<4x12xf32>
    %c0_1 = arith.constant 0 : index
    %c0_2 = arith.constant 0 : index
    %1 = vector.load %arg1[%c0_1, %c0_2] : memref<4x4xf32, #tpu.memory_space<vmem>>, vector<4x4xf32>
    %c0_3 = arith.constant 0 : index
    %c0_4 = arith.constant 0 : index
    %2 = vector.load %arg2[%c0_3, %c0_4] : memref<150x128xf32, #tpu.memory_space<vmem>>, vector<12x128xf32>
    %c12 = arith.constant 12 : index
    %c0_5 = arith.constant 0 : index
    %3 = vector.load %arg2[%c12, %c0_5] : memref<150x128xf32, #tpu.memory_space<vmem>>, vector<4x128xf32>
    %c16 = arith.constant 16 : index
    %c0_6 = arith.constant 0 : index
    %4 = vector.load %arg2[%c16, %c0_6] : memref<150x128xf32, #tpu.memory_space<vmem>>, vector<128x128xf32>
    %c144 = arith.constant 144 : index
    %c0_7 = arith.constant 0 : index
    %5 = vector.load %arg2[%c144, %c0_7] : memref<150x128xf32, #tpu.memory_space<vmem>>, vector<2x128xf32>
    %c146 = arith.constant 146 : index
    %c0_8 = arith.constant 0 : index
    %6 = vector.load %arg2[%c146, %c0_8] : memref<150x128xf32, #tpu.memory_space<vmem>>, vector<1x128xf32>
    %c147 = arith.constant 147 : index
    %c0_9 = arith.constant 0 : index
    %7 = vector.load %arg2[%c147, %c0_9] : memref<150x128xf32, #tpu.memory_space<vmem>>, vector<1x128xf32>
    %c148 = arith.constant 148 : index
    %c0_10 = arith.constant 0 : index
    %8 = vector.load %arg2[%c148, %c0_10] : memref<150x128xf32, #tpu.memory_space<vmem>>, vector<2x1xf32>
    %cst = arith.constant dense<0.000000e+00> : vector<4x128xf32>
    %9 = tpu.matmul %0, %2, %cst {dimension_numbers = #tpu.dot_dimension_numbers<[1], [0], [0], [1], [0, 0, 1, 1], [], []>} : vector<4x12xf32>, vector<12x128xf32>, vector<4x128xf32> -> vector<4x128xf32>
    %cst_11 = arith.constant dense<0.000000e+00> : vector<4x128xf32>
    %10 = tpu.matmul %1, %3, %cst_11 {dimension_numbers = #tpu.dot_dimension_numbers<[1], [0], [0], [1], [0, 0, 1, 1], [], []>} : vector<4x4xf32>, vector<4x128xf32>, vector<4x128xf32> -> vector<4x128xf32>
    %11 = arith.addf %9, %10 : vector<4x128xf32>
    %12 = vector.broadcast %6 : vector<1x128xf32> to vector<4x128xf32>
    %13 = arith.addf %11, %12 : vector<4x128xf32>
    %cst_12 = arith.constant 0.000000e+00 : f32
    %14 = vector.broadcast %cst_12 : f32 to vector<4x128xf32>
    %15 = arith.maximumf %13, %14 : vector<4x128xf32>
    %cst_13 = arith.constant dense<0.000000e+00> : vector<4x128xf32>
    %16 = tpu.matmul %15, %4, %cst_13 {dimension_numbers = #tpu.dot_dimension_numbers<[1], [0], [0], [1], [0, 0, 1, 1], [], []>} : vector<4x128xf32>, vector<128x128xf32>, vector<4x128xf32> -> vector<4x128xf32>
    %17 = vector.broadcast %7 : vector<1x128xf32> to vector<4x128xf32>
    %18 = arith.addf %16, %17 : vector<4x128xf32>
    %cst_14 = arith.constant 0.000000e+00 : f32
    %19 = vector.broadcast %cst_14 : f32 to vector<4x128xf32>
    %20 = arith.maximumf %18, %19 : vector<4x128xf32>
    %cst_15 = arith.constant dense<0.000000e+00> : vector<2x4xf32>
    %21 = tpu.matmul %5, %20, %cst_15 {dimension_numbers = #tpu.dot_dimension_numbers<[1], [1], [0], [0], [0, 0, 1, 0], [], []>} : vector<2x128xf32>, vector<4x128xf32>, vector<2x4xf32> -> vector<2x4xf32>
    %22 = vector.broadcast %8 : vector<2x1xf32> to vector<2x4xf32>
    %23 = arith.addf %21, %22 : vector<2x4xf32>
    %c0_16 = arith.constant 0 : index
    %c0_17 = arith.constant 0 : index
    %24 = vector.load %arg3[%c0_16, %c0_17] : memref<2x4xf32, #tpu.memory_space<vmem>>, vector<2x4xf32>
    tpu.vector_store %arg3[%c0_16, %c0_17], %23 {strides = array<i32>} : memref<2x4xf32, #tpu.memory_space<vmem>>, vector<2x4xf32>,
    return
  }
}

</mosaic_0001>

<llo_original>
// kernel: critic_twin_forward.1
$region0: #{critic_twin_forward.1}
  #allocation0 [shape = 'u32[]', space=smem, size = 0x4, offset = 0x4, fixed_abs, tag = 'smem constant byte address 0x4 - core index']
  #allocation1 [shape = 'u32[72,128]{1,0:T(1,128)}', space=vmem, size = 0x9000, scoped, tag = 'internal scratch']
  %s0 = inlined_call_operand.hbm [shape: f32[4,12], index: 0, kind: input, shape index: {}]
  %s1 = inlined_call_operand.hbm [shape: f32[4,4], index: 1, kind: input, shape index: {}]
  %s2 = inlined_call_operand.hbm [shape: f32[150,128], index: 2, kind: input, shape index: {}]
  %s3 = inlined_call_operand.vmem [shape: f32[2,4], index: 3, kind: output, shape index: {}]
  %s4 = sld [smem:[#allocation0]]
  $region34: #{critic_twin_forward.1} parent=0
    _
  %s6 = ssub.s32 1, %s4
  %s7 = scalar_select 0, %s6, %s4
  $region1: #{critic_twin_forward.1} parent=0
    #allocation2 [shape = 'u8[2048]{0}', space=vmem, size = 0x800, scoped, tag = 'input window, operand 0, single buffered']
    #allocation3 [shape = 's32[1]{0}', space=sflag, size = 0x4, scoped, tag = 'scoped memory for critic_twin_forward.1']
    #allocation4 [shape = 'u8[2048]{0}', space=vmem, size = 0x800, scoped, tag = 'input window, operand 1, single buffered']
    #allocation5 [shape = 's32[1]{0}', space=sflag, size = 0x4, scoped, tag = 'scoped memory for critic_twin_forward.1']
    #allocation6 [shape = 'u8[77824]{0}', space=vmem, size = 0x13000, scoped, tag = 'input window, operand 2, single buffered']
    %8 = vsyncpa [#allocation3], 0
    %9 = vsyncpa [#allocation5], 0
    // Predicated region
    $region2: #{critic_twin_forward.1} parent=1 // pred_check
      _
    $region3: #{critic_twin_forward.1} parent=1 // pred_check_branch
      %11 = sbr.rel (0) target = $region5
    $region4: #{critic_twin_forward.1} parent=1 // pred_region
      %13 = vsyncadd [#allocation3], 0
      %s15 = sshll.u32 %s0, 4
      %s16 = int_to_ptr.hbm [resolvable:$true] %s15
      %s17 = sshll.u32 [#allocation2], 4
      %s18 = int_to_ptr.vmem [resolvable:$true] %s17
      %20 = dma.hbm_to_vmem [thread:$0]  %s16, 64, %s18, [#allocation3]
    $region5: #{critic_twin_forward.1} parent=1 // pred_fallthru
      _
    // Predicated region
    $region6: #{critic_twin_forward.1} parent=1 // pred_check
      _
    $region7: #{critic_twin_forward.1} parent=1 // pred_check_branch
      %22 = sbr.rel (0) target = $region9
    $region8: #{critic_twin_forward.1} parent=1 // pred_region
      %24 = vsyncadd [#allocation5], 0
      %s26 = sshll.u32 %s1, 4
      %s27 = int_to_ptr.hbm [resolvable:$true] %s26
      %s28 = sshll.u32 [#allocation4], 4
      %s29 = int_to_ptr.vmem [resolvable:$true] %s28
      %31 = dma.hbm_to_vmem [thread:$0]  %s27, 64, %s29, [#allocation5]
    $region9: #{critic_twin_forward.1} parent=1 // pred_fallthru
      _
    // Predicated region
    $region10: #{critic_twin_forward.1} parent=1 // pred_check
      _
    $region11: #{critic_twin_forward.1} parent=1 // pred_check_branch
      %33 = sbr.rel (0) target = $region13
    $region12: #{critic_twin_forward.1} parent=1 // pred_region
      %35 = vsyncadd [#allocation5], 0
      %s36 = sshll.u32 %s2, 4
      %s37 = int_to_ptr.hbm [resolvable:$true] %s36
      %s38 = sshll.u32 [#allocation6], 4
      %s39 = int_to_ptr.vmem [resolvable:$true] %s38
      %44 = dma.hbm_to_vmem [thread:$0]  %s37, 2432, %s39, [#allocation5], 128, 128, 8
    $region13: #{critic_twin_forward.1} parent=1 // pred_fallthru
      _
    // Predicated region
    $region14: #{critic_twin_forward.1} parent=1 // pred_check
      _
    $region15: #{critic_twin_forward.1} parent=1 // pred_check_branch
      %46 = sbr.rel (0) target = $region17
    $region16: #{critic_twin_forward.1} parent=1 // pred_region
      %48 = dma.done [#allocation3], 64
    $region17: #{critic_twin_forward.1} parent=1 // pred_fallthru
      _
    // Predicated region
    $region18: #{critic_twin_forward.1} parent=1 // pred_check
      _
    $region19: #{critic_twin_forward.1} parent=1 // pred_check_branch
      %50 = sbr.rel (0) target = $region21
    $region20: #{critic_twin_forward.1} parent=1 // pred_region
      %52 = dma.done [#allocation5], 64
    $region21: #{critic_twin_forward.1} parent=1 // pred_fallthru
      _
    // Predicated region
    $region22: #{critic_twin_forward.1} parent=1 // pred_check
      _
    $region23: #{critic_twin_forward.1} parent=1 // pred_check_branch
      %54 = sbr.rel (0) target = $region25
    $region24: #{critic_twin_forward.1} parent=1 // pred_region
      %56 = dma.done [#allocation5], 2432
    $region25: #{critic_twin_forward.1} parent=1 // pred_fallthru
      _
    %v57 = vld [vmem:[#allocation2] sm:$0xf]
    %v58 = vld [vmem:[#allocation4] sm:$0xf]
    %v59 = vld [vmem:[#allocation6] sm:$0xff]
    %v60 = vld [vmem:[#allocation6 + $0x8] sm:$0xf]
    %v61 = vld [vmem:[#allocation6 + $0xc] sm:$0xf]
    %v62 = vld [vmem:[#allocation6 + $0x10] sm:$0xff]
    %v63 = vld [vmem:[#allocation6 + $0x18] sm:$0xff]
    %v64 = vld [vmem:[#allocation6 + $0x20] sm:$0xff]
    %v65 = vld [vmem:[#allocation6 + $0x28] sm:$0xff]
    %v66 = vld [vmem:[#allocation6 + $0x30] sm:$0xff]
    %v67 = vld [vmem:[#allocation6 + $0x38] sm:$0xff]
    %v68 = vld [vmem:[#allocation6 + $0x40] sm:$0xff]
    %v69 = vld [vmem:[#allocation6 + $0x48] sm:$0xff]
    %v70 = vld [vmem:[#allocation6 + $0x50] sm:$0xff]
    %v71 = vld [vmem:[#allocation6 + $0x58] sm:$0xff]
    %v72 = vld [vmem:[#allocation6 + $0x60] sm:$0xff]
    %v73 = vld [vmem:[#allocation6 + $0x68] sm:$0xff]
    %v74 = vld [vmem:[#allocation6 + $0x70] sm:$0xff]
    %v75 = vld [vmem:[#allocation6 + $0x78] sm:$0xff]
    %v76 = vld [vmem:[#allocation6 + $0x80] sm:$0xff]
    %v77 = vld [vmem:[#allocation6 + $0x88] sm:$0xff]
    %v78 = vld [vmem:[#allocation6 + $0x90] sm:$0x3]
    %v79 = vld [vmem:[#allocation6 + $0x92] sm:$0x1]
    %v80 = vld [vmem:[#allocation6 + $0x93] sm:$0x1]
    %v81 = vld [vmem:[#allocation6 + $0x94] sm:$0x3]
    %vm82 = vcmask 31744
    %v84 = vsel %vm82, %v58, 0
    %vm86 = vcmask 1043456
    %v88 = vsel %vm86, %v61, 0
    %90 = vmatpush.msra.mxu0 0.0
    %91 = vmatpush.msra.mxu0 0.0
    %92 = vmatpush.msra.mxu0 0.0
    %93 = vmatpush.msra.mxu0 0.0
    %94 = vmatpush.msra.mxu0 0.0
    %95 = vmatpush.msra.mxu0 0.0
    %96 = vmatpush.msra.mxu0 0.0
    %97 = vmatpush.msra.mxu0 0.0
    %98 = vmatpush.msra.mxu0 0.0
    %99 = vmatpush.msra.mxu0 0.0
    %100 = vmatpush.msra.mxu0 0.0
    %101 = vmatpush.msra.mxu0 0.0
    %102 = vmatpush.msra.mxu0 0.0
    %103 = vmatpush.msra.mxu0 0.0
    %104 = vmatpush.msra.mxu0 0.0
    %105 = vmatpush.msra.mxu0 %v88
    %106 = vmatmul.f32.gmra.mxu0 %v84
    %v107 = vpop.f32.mrf.mxu0
    %v108 = vadd.f32 0.0, %v107
    %109 = vdwg.mxu0
    %vm110 = vcmask 97280
    %v112 = vsel %vm110, %v57, 0
    %v115 = vsel %vm86, %v60, 0
    %117 = vmatpush.msra.mxu0 0.0
    %118 = vmatpush.msra.mxu0 0.0
    %119 = vmatpush.msra.mxu0 0.0
    %120 = vmatpush.msra.mxu0 0.0
    %121 = vmatpush.msra.mxu0 0.0
    %122 = vmatpush.msra.mxu0 0.0
    %123 = vmatpush.msra.mxu0 0.0
    %124 = vmatpush.msra.mxu0 0.0
    %125 = vmatpush.msra.mxu0 0.0
    %126 = vmatpush.msra.mxu0 0.0
    %127 = vmatpush.msra.mxu0 0.0
    %128 = vmatpush.msra.mxu0 0.0
    %129 = vmatpush.msra.mxu0 0.0
    %130 = vmatpush.msra.mxu0 0.0
    %131 = vmatpush.msra.mxu0 %v115
    %132 = vmatpush.msra.mxu0 %v59
    %133 = vmatmul.f32.gmra.mxu0 %v112
    %v134 = vpop.f32.mrf.mxu0
    %v135 = vadd.f32 %v108, %v134
    %136 = vdwg.mxu0
    %v137 = vperm.slane %v79, 0
    %v138 = vadd.f32 %v135, %v137
    %v139 = vmax.f32 %v138, 0.0
    %v140 = vperm.slane %v80, 0
    %141 = vmatpush.msra.mxu0 %v77
    %142 = vmatpush.msra.mxu0 %v76
    %143 = vmatpush.msra.mxu0 %v75
    %144 = vmatpush.msra.mxu0 %v74
    %145 = vmatpush.msra.mxu0 %v73
    %146 = vmatpush.msra.mxu0 %v72
    %147 = vmatpush.msra.mxu0 %v71
    %148 = vmatpush.msra.mxu0 %v70
    %149 = vmatpush.msra.mxu0 %v69
    %150 = vmatpush.msra.mxu0 %v68
    %151 = vmatpush.msra.mxu0 %v67
    %152 = vmatpush.msra.mxu0 %v66
    %153 = vmatpush.msra.mxu0 %v65
    %154 = vmatpush.msra.mxu0 %v64
    %155 = vmatpush.msra.mxu0 %v63
    %156 = vmatpush.msra.mxu0 %v62
    %157 = vmatmul.f32.gmra.mxu0 %v139
    %v158 = vpop.f32.mrf.mxu0
    %v159 = vadd.f32 %v140, %v158
    %160 = vdwg.mxu0
    %v161 = vmax.f32 %v159, 0.0
    %163 = vset.pattern.permute.xlu0 0
    %164 = vperm.xlu0 %163, %v81
    %v165 = vpop.permute.xlu0 %164
    %167 = vmatpush.xpose.msra.mxu0 0.0
    %168 = vmatpush.xpose.msra.mxu0 0.0
    %169 = vmatpush.xpose.msra.mxu0 0.0
    %170 = vmatpush.xpose.msra.mxu0 0.0
    %171 = vmatpush.xpose.msra.mxu0 0.0
    %172 = vmatpush.xpose.msra.mxu0 0.0
    %173 = vmatpush.xpose.msra.mxu0 0.0
    %174 = vmatpush.xpose.msra.mxu0 0.0
    %175 = vmatpush.xpose.msra.mxu0 0.0
    %176 = vmatpush.xpose.msra.mxu0 0.0
    %177 = vmatpush.xpose.msra.mxu0 0.0
    %178 = vmatpush.xpose.msra.mxu0 0.0
    %179 = vmatpush.xpose.msra.mxu0 0.0
    %180 = vmatpush.xpose.msra.mxu0 0.0
    %181 = vmatpush.xpose.msra.mxu0 0.0
    %182 = vmatpush.xpose.msra.mxu0 %v161
    %183 = vmatmul.f32.gmra.mxu0 %v78
    %v184 = vpop.f32.mrf.mxu0
    %v185 = vadd.f32 %v165, %v184
    %186 = vdwg.mxu0
    %vm187 = vcmask 25600
    %188 = vst.msk [vmem:[%s3] sm:$0x3] %vm187, %v185
    // Predicated region
    $region26: #{critic_twin_forward.1} parent=1 // pred_check
      _
    $region27: #{critic_twin_forward.1} parent=1 // pred_check_branch
      %190 = sbr.rel (0) target = $region29
    $region28: #{critic_twin_forward.1} parent=1 // pred_region
      _
    $region29: #{critic_twin_forward.1} parent=1 // pred_fallthru
      _
    // Predicated region
    $region30: #{critic_twin_forward.1} parent=1 // pred_check
      _
    $region31: #{critic_twin_forward.1} parent=1 // pred_check_branch
      %192 = sbr.rel (0) target = $region33
    $region32: #{critic_twin_forward.1} parent=1 // pred_region
      _
    $region33: #{critic_twin_forward.1} parent=1 // pred_fallthru
      _
    %193 = vsyncpa [#allocation3], 1
    %194 = vsyncpa [#allocation5], 1

</llo_original>
